<compile_context>
chip_gen: v7x
topology: tpu7x:2x2x1
jax: 0.10.0
libtpu: 0.0.40
codegen_flags: <defaults>
</compile_context>

<pallas_src>
import functools

import jax
import jax.numpy as jnp
from jax import lax
from jax.experimental import pallas as pl
from jax.experimental.pallas import tpu as pltpu

_TARGET_BLOCK_BYTES = 4 * 1024 * 1024  # per policy input block


def _make_policy_kernel(tb, chunk, n_chunks, out_rows, A, B, need_mask):
    """Build a kernel writing per-block partial sums of target_ps * log_ps."""

    def kernel(log_ps_ref, target_ps_ref, out_ref):
        row0 = pl.program_id(0) * tb  # first global row of this batch tile

        if need_mask:
            # Local row index within a chunk, broadcast across the lane dim.
            local_rows = lax.broadcasted_iota(jnp.int32, (chunk, A), 0)

        def chunk_prod(c):
            if isinstance(c, int):
                start = c * chunk
            else:
                start = pl.multiple_of(c * chunk, chunk)
            lp = log_ps_ref[pl.ds(start, chunk), :].astype(jnp.float32)
            tp = target_ps_ref[pl.ds(start, chunk), :].astype(jnp.float32)
            prod = lp * tp
            if need_mask:
                # Rows at/after B are DMA padding (garbage) -> zero them out.
                valid = B - row0 - c * chunk  # scalar; may be <=0 or > chunk
                prod = jnp.where(local_rows < valid, prod, 0.0)
            return prod

        if out_rows == 8:
            # Fold each chunk in groups of 8 rows: whole-vreg VPU adds only,
            # no cross-lane/XLU work in the steady state.
            def body(c, acc):
                return acc + chunk_prod(c).reshape(chunk // 8, 8, A).sum(axis=0)

            init = jnp.zeros((8, A), jnp.float32)
        else:
            # Degenerate tiny-batch path (tb not a multiple of 8).
            def body(c, acc):
                return acc + chunk_prod(c).sum(axis=0, keepdims=True)

            init = jnp.zeros((1, A), jnp.float32)

        if n_chunks == 1:
            out_ref[0] = body(0, init)
        else:
            out_ref[0] = lax.fori_loop(0, n_chunks, body, init, unroll=True)

    return kernel


def _pick_tiling(B, A, itemsize, block_rows):
    """Choose (tb, chunk, n_chunks, out_rows) for the batch-tile grid."""
    align = 8 if itemsize >= 4 else 16  # sublane tile: f32 -> 8, bf16/i8 -> 16
    unit = 8 * align                    # lets the 8-way chunked fold divide tb

    if block_rows is not None:
        tb = max(1, min(int(block_rows), B))
    elif B < align:
        tb = B                          # single full-array block (always legal)
    else:
        raw = max(align, _TARGET_BLOCK_BYTES // max(1, A * itemsize))
        tb = (min(raw, B) // align) * align
        if tb >= unit:
            tb = (tb // unit) * unit

    n_chunks = 1
    if tb % 8 == 0:
        for cand in (8, 4, 2):
            if tb % (cand * align) == 0:
                n_chunks = cand
                break
    chunk = tb // n_chunks
    out_rows = 8 if tb % 8 == 0 else 1
    return tb, chunk, n_chunks, out_rows


def _policy_partials(log_ps, target_ps, tb, chunk, n_chunks, out_rows):
    B, A = log_ps.shape
    num_blocks = pl.cdiv(B, tb)
    need_mask = (B % tb) != 0
    kernel = _make_policy_kernel(tb, chunk, n_chunks, out_rows, A, B, need_mask)
    return pl.pallas_call(
        kernel,
        grid=(num_blocks,),
        in_specs=[
            pl.BlockSpec((tb, A), lambda i: (i, 0)),
            pl.BlockSpec((tb, A), lambda i: (i, 0)),
        ],
        out_specs=pl.BlockSpec((1, out_rows, A), lambda i: (i, 0, 0)),
        out_shape=jax.ShapeDtypeStruct((num_blocks, out_rows, A), jnp.float32),
        compiler_params=pltpu.CompilerParams(
            dimension_semantics=("parallel",),
            vmem_limit_bytes=32 * 1024 * 1024,
        ),
    )(log_ps, target_ps)


@functools.partial(jax.jit, static_argnames=("block_rows",))
def alpha_loss(log_ps, vs, target_ps, target_vs, block_rows=None):
    """AlphaZero loss.  Returns (total_loss, value_loss, policy_loss), i.e. the
    module's return value plus its self.v_loss / self.p_loss attributes.
    Inputs may be f32 or bf16 (any mix); compute/accumulation is f32."""
    assert log_ps.ndim == 2 and log_ps.shape == target_ps.shape
    B, A = log_ps.shape

    itemsize = min(jnp.dtype(log_ps.dtype).itemsize,
                   jnp.dtype(target_ps.dtype).itemsize)
    tb, chunk, n_chunks, out_rows = _pick_tiling(B, A, itemsize, block_rows)

    partials = _policy_partials(log_ps, target_ps, tb, chunk, n_chunks, out_rows)
    policy_loss = -jnp.sum(partials) / jnp.float32(B)

    # Value term: O(B) scalars -> plain XLA in the wrapper (keeps the Pallas
    # kernel's I/O lane-dense and avoids 3 tiny DMAs + masked (tb,1) stores
    # per grid step).  f32 compute regardless of input dtype (v5e-safe).
    diff = vs.astype(jnp.float32) - target_vs.astype(jnp.float32)
    value_loss = jnp.mean(diff * diff)

    return value_loss + policy_loss, value_loss, policy_loss


def alpha_loss_ref(log_ps, vs, target_ps, target_vs):
    value_loss = jnp.mean(
        (vs.astype(jnp.float32) - target_vs.astype(jnp.float32)) ** 2)
    policy_loss = -jnp.mean(jnp.sum(
        target_ps.astype(jnp.float32) * log_ps.astype(jnp.float32), axis=1))
    return value_loss + policy_loss, value_loss, policy_loss


def _make_inputs(key, B, A, dtype=jnp.float32):
    k1, k2, k3, k4 = jax.random.split(key, 4)
    logits = jax.random.normal(k1, (B, A), dtype=jnp.float32)
    log_ps = jax.nn.log_softmax(logits, axis=1)
    vs = jnp.tanh(jax.random.normal(k2, (B, 1), dtype=jnp.float32))
    target_logits = jax.random.normal(k3, (B, A), dtype=jnp.float32)
    target_ps = jax.nn.softmax(target_logits, axis=1)
    target_vs = jnp.sign(jax.random.normal(k4, (B, 1), dtype=jnp.float32))
    return (log_ps.astype(dtype), vs.astype(dtype),
            target_ps.astype(dtype), target_vs.astype(dtype))


if __name__ == "__main__":
    key = jax.random.PRNGKey(0)
    k_a, k_b, k_c = jax.random.split(key, 3)

    # --- Case 1: small aligned f32 (B=8 batch, A=64 actions, e.g. 8x8 board).
    lp, v, tp, tv = _make_inputs(k_a, 8, 64)
    total, v_loss, p_loss = alpha_loss(lp, v, tp, tv)
    total = jax.block_until_ready(total)
    r_total, r_v, r_p = alpha_loss_ref(lp, v, tp, tv)
    assert jnp.allclose(total, r_total, rtol=1e-5, atol=1e-5), (total, r_total)
    assert jnp.allclose(v_loss, r_v, rtol=1e-5, atol=1e-5), (v_loss, r_v)
    assert jnp.allclose(p_loss, r_p, rtol=1e-5, atol=1e-5), (p_loss, r_p)

    # --- Case 2: unaligned B and A (B=40, A=65) -- exercises the no-pad path
    # (block last dim == true A) and, with an explicit small tile, the
    # partial-last-tile row mask.
    lp, v, tp, tv = _make_inputs(k_b, 40, 65)
    r_total, r_v, r_p = alpha_loss_ref(lp, v, tp, tv)
    for br in (None, 16):   # default single-block tiling, then 3 tiles w/ mask
        total, v_loss, p_loss = alpha_loss(lp, v, tp, tv, block_rows=br)
        total = jax.block_until_ready(total)
        assert jnp.allclose(total, r_total, rtol=1e-5, atol=1e-5), (br, total, r_total)
        assert jnp.allclose(p_loss, r_p, rtol=1e-5, atol=1e-5), (br, p_loss, r_p)

    # --- Case 3: native bf16 inputs (no wrapper upcast -> half the HBM
    # traffic); compute is widened to f32 in-kernel.  B=24 with tb=16 also
    # exercises the masked partial tile on the bf16 path.
    lp, v, tp, tv = _make_inputs(k_c, 24, 64, dtype=jnp.bfloat16)
    t16, _, _ = alpha_loss(lp, v, tp, tv)
    t16 = jax.block_until_ready(t16)
    r16, _, _ = alpha_loss_ref(lp, v, tp, tv)   # ref upcasts the same bf16 data
    assert jnp.allclose(t16, r16, rtol=1e-3, atol=1e-3), (t16, r16)

    print("KERNEL_OK")
</pallas_src>

<mosaic_0001>
module attributes {stable_mosaic.version = 11 : i64} {
  func.func @kernel(%arg0: i32, %arg1: memref<8x64xf32, #tpu.memory_space<vmem>>, %arg2: memref<8x64xf32, #tpu.memory_space<vmem>>, %arg3: memref<1x8x64xf32, #tpu.memory_space<vmem>>) attributes {dimension_semantics = [#tpu.dimension_semantics<parallel>], iteration_bounds = array<i64: 1>, scalar_prefetch = 0 : i64, scratch_operands = 0 : i64, tpu.core_type = #tpu.core_type<tc>, window_params = [{transform_indices = @transform_0, window_bounds = array<i64: 8, 64>}, {transform_indices = @transform_1, window_bounds = array<i64: 8, 64>}, {transform_indices = @transform_2, window_bounds = array<i64: 1, 8, 64>}]} {
    %cst = arith.constant 0.000000e+00 : f32
    %0 = vector.broadcast %cst : f32 to vector<8x64xf32>
    %c0 = arith.constant 0 : index
    %c0_0 = arith.constant 0 : index
    %1 = vector.load %arg1[%c0, %c0_0] : memref<8x64xf32, #tpu.memory_space<vmem>>, vector<8x64xf32>
    %c0_1 = arith.constant 0 : index
    %c0_2 = arith.constant 0 : index
    %2 = vector.load %arg2[%c0_1, %c0_2] : memref<8x64xf32, #tpu.memory_space<vmem>>, vector<8x64xf32>
    %3 = arith.mulf %1, %2 : vector<8x64xf32>
    %4 = vector.shape_cast %3 : vector<8x64xf32> to vector<1x8x64xf32>
    %cst_3 = arith.constant dense<0.000000e+00> : vector<8x64xf32>
    %5 = vector.multi_reduction <add>, %4, %cst_3 [0] : vector<1x8x64xf32> to vector<8x64xf32>
    %6 = arith.addf %0, %5 : vector<8x64xf32>
    %c0_4 = arith.constant 0 : index
    %c0_5 = arith.constant 0 : index
    %c0_6 = arith.constant 0 : index
    %7 = vector.load %arg3[%c0_4, %c0_5, %c0_6] : memref<1x8x64xf32, #tpu.memory_space<vmem>>, vector<1x8x64xf32>
    %8 = vector.shape_cast %7 : vector<1x8x64xf32> to vector<8x64xf32>
    %9 = vector.shape_cast %6 : vector<8x64xf32> to vector<1x8x64xf32>
    tpu.vector_store %arg3[%c0_4, %c0_5, %c0_6], %9 {strides = array<i32>} : memref<1x8x64xf32, #tpu.memory_space<vmem>>, vector<1x8x64xf32>,
    return
  }
  func.func @transform_0(%arg0: i32) -> (i32, i32) {
    %c0_i32 = arith.constant 0 : i32
    %c0_i32_0 = arith.constant 0 : i32
    return %arg0, %c0_i32 : i32, i32
  }
  func.func @transform_1(%arg0: i32) -> (i32, i32) {
    %c0_i32 = arith.constant 0 : i32
    %c0_i32_0 = arith.constant 0 : i32
    return %arg0, %c0_i32 : i32, i32
  }
  func.func @transform_2(%arg0: i32) -> (i32, i32, i32) {
    %c0_i32 = arith.constant 0 : i32
    %c0_i32_0 = arith.constant 0 : i32
    %c0_i32_1 = arith.constant 0 : i32
    return %arg0, %c0_i32, %c0_i32_0 : i32, i32, i32
  }
}

</mosaic_0001>

<llo_original>
// kernel: alpha_loss.1
$region0: #{alpha_loss.1}
  #allocation0 [shape = 'u32[]', space=smem, size = 0x4, offset = 0x4, fixed_abs, tag = 'smem constant byte address 0x4 - core index']
  #allocation1 [shape = 'u32[144,128]{1,0:T(1,128)}', space=vmem, size = 0x12000, scoped, tag = 'internal scratch']
  %s0 = inlined_call_operand.vmem [shape: f32[8,64], index: 0, kind: input, shape index: {}]
  %s1 = inlined_call_operand.hbm [shape: f32[8,64], index: 1, kind: input, shape index: {}]
  %s2 = inlined_call_operand.vmem [shape: f32[1,8,64], index: 2, kind: output, shape index: {}]
  %s3 = sld [smem:[#allocation0]]
  $region22: #{alpha_loss.1} parent=0
    _
  %s5 = ssub.s32 1, %s3
  %s6 = scalar_select 0, %s5, %s3
  $region1: #{alpha_loss.1} parent=0
    #allocation2 [shape = 'u8[4096]{0}', space=vmem, size = 0x1000, scoped, tag = 'input window, operand 1, single buffered']
    #allocation3 [shape = 's32[1]{0}', space=sflag, size = 0x4, scoped, tag = 'scoped memory for alpha_loss.1']
    %7 = vsyncpa [#allocation3], 0
    // Predicated region
    $region2: #{alpha_loss.1} parent=1 // pred_check
      _
    $region3: #{alpha_loss.1} parent=1 // pred_check_branch
      %9 = sbr.rel (0) target = $region5
    $region4: #{alpha_loss.1} parent=1 // pred_region
      _
    $region5: #{alpha_loss.1} parent=1 // pred_fallthru
      _
    // Predicated region
    $region6: #{alpha_loss.1} parent=1 // pred_check
      _
    $region7: #{alpha_loss.1} parent=1 // pred_check_branch
      %11 = sbr.rel (0) target = $region9
    $region8: #{alpha_loss.1} parent=1 // pred_region
      %s13 = ssub.s32 128, 128
      %14 = vsyncadd [#allocation3], %s13
      %s16 = sshll.u32 [#allocation2], 4
      %s17 = int_to_ptr.vmem [resolvable:$true] %s16
      %19 = dma.hbm_to_vmem [thread:$0]  %s1, 128, %s17, [#allocation3]
    $region9: #{alpha_loss.1} parent=1 // pred_fallthru
      _
    // Predicated region
    $region10: #{alpha_loss.1} parent=1 // pred_check
      _
    $region11: #{alpha_loss.1} parent=1 // pred_check_branch
      %21 = sbr.rel (0) target = $region13
    $region12: #{alpha_loss.1} parent=1 // pred_region
      %22 = dma.done [#allocation3], 128
    $region13: #{alpha_loss.1} parent=1 // pred_fallthru
      _
    %v23 = vld [vmem:[%s0] sm:$0xff]
    %v24 = vld [vmem:[#allocation2] sm:$0xff]
    %v25 = vmul.f32 %v23, %v24
    %v26 = vadd.f32 %v25, 0.0
    %v27 = vadd.f32 %v26, 0.0
    %vm28 = vcmask 523264
    %29 = vst.msk [vmem:[%s2] sm:$0xff] %vm28, %v27
    // Predicated region
    $region14: #{alpha_loss.1} parent=1 // pred_check
      _
    $region15: #{alpha_loss.1} parent=1 // pred_check_branch
      %31 = sbr.rel (0) target = $region17
    $region16: #{alpha_loss.1} parent=1 // pred_region
      _
    $region17: #{alpha_loss.1} parent=1 // pred_fallthru
      _
    // Predicated region
    $region18: #{alpha_loss.1} parent=1 // pred_check
      _
    $region19: #{alpha_loss.1} parent=1 // pred_check_branch
      %33 = sbr.rel (0) target = $region21
    $region20: #{alpha_loss.1} parent=1 // pred_region
      _
    $region21: #{alpha_loss.1} parent=1 // pred_fallthru
      _
    %34 = vsyncpa [#allocation3], 1

</llo_original>
